<compile_context>
chip_gen: v7x
topology: tpu7x:2x2x1
jax: 0.10.0
libtpu: 0.0.40
codegen_flags: <defaults>
</compile_context>

<pallas_src>
import jax
import jax.numpy as jnp
from jax.experimental import pallas as pl
from jax.experimental.pallas import tpu as pltpu


# -----------------------------------------------------------------------------
# Copy path: N in-flight HBM->HBM DMAs, no VMEM staging, native shape/layout.
# -----------------------------------------------------------------------------
def _chunk_layout(leading_dim: int, n_chunks: int):
    """Static (start, size) slabs along the leading axis."""
    n = max(1, min(n_chunks, leading_dim))
    base, rem = divmod(leading_dim, n)
    sizes = [base + (1 if i < rem else 0) for i in range(n)]
    starts = []
    off = 0
    for s in sizes:
        starts.append(off)
        off += s
    return starts, sizes


def _make_copy_kernel(starts, sizes):
    n = len(starts)

    def kernel(x_hbm, o_hbm, sems):
        # Start every chunk DMA first (multiple descriptors in flight), then
        # wait on all of them.  Each slab is a contiguous leading-axis slice,
        # so every DMA is a plain streaming copy.
        copies = []
        for i in range(n):
            src = x_hbm.at[pl.ds(starts[i], sizes[i])]
            dst = o_hbm.at[pl.ds(starts[i], sizes[i])]
            cp = pltpu.make_async_copy(src, dst, sems.at[i])
            cp.start()
            copies.append(cp)
        for cp in copies:
            cp.wait()

    return kernel, n


def _make_scalar_copy_kernel():
    def kernel(x_hbm, o_hbm, sems):
        cp = pltpu.make_async_copy(x_hbm, o_hbm, sems.at[0])
        cp.start()
        cp.wait()

    return kernel, 1


def _identity_dma_copy(x: jax.Array, n_chunks: int = 4) -> jax.Array:
    if x.ndim == 0:
        kernel, n = _make_scalar_copy_kernel()
    else:
        starts, sizes = _chunk_layout(x.shape[0], n_chunks)
        kernel, n = _make_copy_kernel(starts, sizes)

    return pl.pallas_call(
        kernel,
        out_shape=jax.ShapeDtypeStruct(x.shape, x.dtype),
        # Keep both operands in their HBM home; the kernel only issues DMAs.
        in_specs=[pl.BlockSpec(memory_space=pl.ANY)],
        out_specs=pl.BlockSpec(memory_space=pl.ANY),
        scratch_shapes=[pltpu.SemaphoreType.DMA((n,))],
        # Pure memory traffic, zero FLOPs: lets XLA schedule around it.
        cost_estimate=pl.CostEstimate(
            flops=0,
            transcendentals=0,
            bytes_accessed=2 * x.size * x.dtype.itemsize,
        ),
    )(x)


# -----------------------------------------------------------------------------
# Public entry point.
# -----------------------------------------------------------------------------
def identity(x: jax.Array, *, copy: bool = False) -> jax.Array:
    """Pallas identity: returns `x` unchanged (shape & dtype preserved).

    copy=False (default): pure passthrough — zero cost, no custom call,
                          no XLA fusion barrier.
    copy=True: materialize a distinct output buffer via chunked HBM->HBM DMAs.
    """
    if copy:
        return _identity_dma_copy(x)
    return x


if __name__ == "__main__":
    key = jax.random.PRNGKey(0)
    # Shape from the module docstring example: torch.randn(128, 20).
    x = jax.random.normal(key, (128, 20), dtype=jnp.float32)

    y_pass = jax.block_until_ready(identity(x))
    y_copy = jax.block_until_ready(identity(x, copy=True))

    assert y_pass.shape == x.shape and y_pass.dtype == x.dtype
    assert y_copy.shape == x.shape and y_copy.dtype == x.dtype
    assert bool(jnp.array_equal(y_pass, x))
    assert bool(jnp.array_equal(y_copy, x))
    print("KERNEL_OK")
</pallas_src>

<mosaic_0001>
module attributes {stable_mosaic.version = 11 : i64} {
  func.func @kernel(%arg0: memref<128x20xf32, #tpu.memory_space<any>>, %arg1: memref<128x20xf32, #tpu.memory_space<any>>, %arg2: memref<4x!tpu.dma_semaphore, #tpu.memory_space<semaphore_mem>>) attributes {dimension_semantics = [], scalar_prefetch = 0 : i64, scratch_operands = 1 : i64, tpu.core_type = #tpu.core_type<tc>} {
    %c0_i32 = arith.constant 0 : i32
    %c0_i32_0 = arith.constant 0 : i32
    %c0_i32_1 = arith.constant 0 : i32
    %0 = tpu.memref_slice %arg0[%c0_i32_0, %c0_i32_1] : memref<128x20xf32, #tpu.memory_space<any>> -> memref<32x20xf32, #tpu.memory_space<any>>
    %c0_i32_2 = arith.constant 0 : i32
    %c0_i32_3 = arith.constant 0 : i32
    %1 = tpu.memref_slice %arg1[%c0_i32_2, %c0_i32_3] : memref<128x20xf32, #tpu.memory_space<any>> -> memref<32x20xf32, #tpu.memory_space<any>>
    %2 = tpu.memref_slice %arg2[%c0_i32] : memref<4x!tpu.dma_semaphore, #tpu.memory_space<semaphore_mem>> -> memref<1x!tpu.dma_semaphore, #tpu.memory_space<semaphore_mem>>
    %3 = tpu.memref_squeeze %2 : memref<1x!tpu.dma_semaphore, #tpu.memory_space<semaphore_mem>> -> memref<!tpu.dma_semaphore, #tpu.memory_space<semaphore_mem>>
    tpu.enqueue_dma source(%0 : memref<32x20xf32, #tpu.memory_space<any>>) target(%1 : memref<32x20xf32, #tpu.memory_space<any>>) target_semaphore(%3 : memref<!tpu.dma_semaphore, #tpu.memory_space<semaphore_mem>>)
    %c1_i32 = arith.constant 1 : i32
    %c32_i32 = arith.constant 32 : i32
    %c0_i32_4 = arith.constant 0 : i32
    %4 = tpu.memref_slice %arg0[%c32_i32, %c0_i32_4] : memref<128x20xf32, #tpu.memory_space<any>> -> memref<32x20xf32, #tpu.memory_space<any>>
    %c32_i32_5 = arith.constant 32 : i32
    %c0_i32_6 = arith.constant 0 : i32
    %5 = tpu.memref_slice %arg1[%c32_i32_5, %c0_i32_6] : memref<128x20xf32, #tpu.memory_space<any>> -> memref<32x20xf32, #tpu.memory_space<any>>
    %6 = tpu.memref_slice %arg2[%c1_i32] : memref<4x!tpu.dma_semaphore, #tpu.memory_space<semaphore_mem>> -> memref<1x!tpu.dma_semaphore, #tpu.memory_space<semaphore_mem>>
    %7 = tpu.memref_squeeze %6 : memref<1x!tpu.dma_semaphore, #tpu.memory_space<semaphore_mem>> -> memref<!tpu.dma_semaphore, #tpu.memory_space<semaphore_mem>>
    tpu.enqueue_dma source(%4 : memref<32x20xf32, #tpu.memory_space<any>>) target(%5 : memref<32x20xf32, #tpu.memory_space<any>>) target_semaphore(%7 : memref<!tpu.dma_semaphore, #tpu.memory_space<semaphore_mem>>)
    %c2_i32 = arith.constant 2 : i32
    %c64_i32 = arith.constant 64 : i32
    %c0_i32_7 = arith.constant 0 : i32
    %8 = tpu.memref_slice %arg0[%c64_i32, %c0_i32_7] : memref<128x20xf32, #tpu.memory_space<any>> -> memref<32x20xf32, #tpu.memory_space<any>>
    %c64_i32_8 = arith.constant 64 : i32
    %c0_i32_9 = arith.constant 0 : i32
    %9 = tpu.memref_slice %arg1[%c64_i32_8, %c0_i32_9] : memref<128x20xf32, #tpu.memory_space<any>> -> memref<32x20xf32, #tpu.memory_space<any>>
    %10 = tpu.memref_slice %arg2[%c2_i32] : memref<4x!tpu.dma_semaphore, #tpu.memory_space<semaphore_mem>> -> memref<1x!tpu.dma_semaphore, #tpu.memory_space<semaphore_mem>>
    %11 = tpu.memref_squeeze %10 : memref<1x!tpu.dma_semaphore, #tpu.memory_space<semaphore_mem>> -> memref<!tpu.dma_semaphore, #tpu.memory_space<semaphore_mem>>
    tpu.enqueue_dma source(%8 : memref<32x20xf32, #tpu.memory_space<any>>) target(%9 : memref<32x20xf32, #tpu.memory_space<any>>) target_semaphore(%11 : memref<!tpu.dma_semaphore, #tpu.memory_space<semaphore_mem>>)
    %c3_i32 = arith.constant 3 : i32
    %c96_i32 = arith.constant 96 : i32
    %c0_i32_10 = arith.constant 0 : i32
    %12 = tpu.memref_slice %arg0[%c96_i32, %c0_i32_10] : memref<128x20xf32, #tpu.memory_space<any>> -> memref<32x20xf32, #tpu.memory_space<any>>
    %c96_i32_11 = arith.constant 96 : i32
    %c0_i32_12 = arith.constant 0 : i32
    %13 = tpu.memref_slice %arg1[%c96_i32_11, %c0_i32_12] : memref<128x20xf32, #tpu.memory_space<any>> -> memref<32x20xf32, #tpu.memory_space<any>>
    %14 = tpu.memref_slice %arg2[%c3_i32] : memref<4x!tpu.dma_semaphore, #tpu.memory_space<semaphore_mem>> -> memref<1x!tpu.dma_semaphore, #tpu.memory_space<semaphore_mem>>
    %15 = tpu.memref_squeeze %14 : memref<1x!tpu.dma_semaphore, #tpu.memory_space<semaphore_mem>> -> memref<!tpu.dma_semaphore, #tpu.memory_space<semaphore_mem>>
    tpu.enqueue_dma source(%12 : memref<32x20xf32, #tpu.memory_space<any>>) target(%13 : memref<32x20xf32, #tpu.memory_space<any>>) target_semaphore(%15 : memref<!tpu.dma_semaphore, #tpu.memory_space<semaphore_mem>>)
    %c0_i32_13 = arith.constant 0 : i32
    %c0_i32_14 = arith.constant 0 : i32
    %c0_i32_15 = arith.constant 0 : i32
    %16 = tpu.memref_slice %arg0[%c0_i32_14, %c0_i32_15] : memref<128x20xf32, #tpu.memory_space<any>> -> memref<32x20xf32, #tpu.memory_space<any>>
    %c0_i32_16 = arith.constant 0 : i32
    %c0_i32_17 = arith.constant 0 : i32
    %17 = tpu.memref_slice %arg1[%c0_i32_16, %c0_i32_17] : memref<128x20xf32, #tpu.memory_space<any>> -> memref<32x20xf32, #tpu.memory_space<any>>
    %18 = tpu.memref_slice %arg2[%c0_i32_13] : memref<4x!tpu.dma_semaphore, #tpu.memory_space<semaphore_mem>> -> memref<1x!tpu.dma_semaphore, #tpu.memory_space<semaphore_mem>>
    %19 = tpu.memref_squeeze %18 : memref<1x!tpu.dma_semaphore, #tpu.memory_space<semaphore_mem>> -> memref<!tpu.dma_semaphore, #tpu.memory_space<semaphore_mem>>
    tpu.wait_dma2 semaphore(%19 : memref<!tpu.dma_semaphore, #tpu.memory_space<semaphore_mem>>) src(%16 : memref<32x20xf32, #tpu.memory_space<any>>) dst(%17 : memref<32x20xf32, #tpu.memory_space<any>>)
    %c1_i32_18 = arith.constant 1 : i32
    %c32_i32_19 = arith.constant 32 : i32
    %c0_i32_20 = arith.constant 0 : i32
    %20 = tpu.memref_slice %arg0[%c32_i32_19, %c0_i32_20] : memref<128x20xf32, #tpu.memory_space<any>> -> memref<32x20xf32, #tpu.memory_space<any>>
    %c32_i32_21 = arith.constant 32 : i32
    %c0_i32_22 = arith.constant 0 : i32
    %21 = tpu.memref_slice %arg1[%c32_i32_21, %c0_i32_22] : memref<128x20xf32, #tpu.memory_space<any>> -> memref<32x20xf32, #tpu.memory_space<any>>
    %22 = tpu.memref_slice %arg2[%c1_i32_18] : memref<4x!tpu.dma_semaphore, #tpu.memory_space<semaphore_mem>> -> memref<1x!tpu.dma_semaphore, #tpu.memory_space<semaphore_mem>>
    %23 = tpu.memref_squeeze %22 : memref<1x!tpu.dma_semaphore, #tpu.memory_space<semaphore_mem>> -> memref<!tpu.dma_semaphore, #tpu.memory_space<semaphore_mem>>
    tpu.wait_dma2 semaphore(%23 : memref<!tpu.dma_semaphore, #tpu.memory_space<semaphore_mem>>) src(%20 : memref<32x20xf32, #tpu.memory_space<any>>) dst(%21 : memref<32x20xf32, #tpu.memory_space<any>>)
    %c2_i32_23 = arith.constant 2 : i32
    %c64_i32_24 = arith.constant 64 : i32
    %c0_i32_25 = arith.constant 0 : i32
    %24 = tpu.memref_slice %arg0[%c64_i32_24, %c0_i32_25] : memref<128x20xf32, #tpu.memory_space<any>> -> memref<32x20xf32, #tpu.memory_space<any>>
    %c64_i32_26 = arith.constant 64 : i32
    %c0_i32_27 = arith.constant 0 : i32
    %25 = tpu.memref_slice %arg1[%c64_i32_26, %c0_i32_27] : memref<128x20xf32, #tpu.memory_space<any>> -> memref<32x20xf32, #tpu.memory_space<any>>
    %26 = tpu.memref_slice %arg2[%c2_i32_23] : memref<4x!tpu.dma_semaphore, #tpu.memory_space<semaphore_mem>> -> memref<1x!tpu.dma_semaphore, #tpu.memory_space<semaphore_mem>>
    %27 = tpu.memref_squeeze %26 : memref<1x!tpu.dma_semaphore, #tpu.memory_space<semaphore_mem>> -> memref<!tpu.dma_semaphore, #tpu.memory_space<semaphore_mem>>
    tpu.wait_dma2 semaphore(%27 : memref<!tpu.dma_semaphore, #tpu.memory_space<semaphore_mem>>) src(%24 : memref<32x20xf32, #tpu.memory_space<any>>) dst(%25 : memref<32x20xf32, #tpu.memory_space<any>>)
    %c3_i32_28 = arith.constant 3 : i32
    %c96_i32_29 = arith.constant 96 : i32
    %c0_i32_30 = arith.constant 0 : i32
    %28 = tpu.memref_slice %arg0[%c96_i32_29, %c0_i32_30] : memref<128x20xf32, #tpu.memory_space<any>> -> memref<32x20xf32, #tpu.memory_space<any>>
    %c96_i32_31 = arith.constant 96 : i32
    %c0_i32_32 = arith.constant 0 : i32
    %29 = tpu.memref_slice %arg1[%c96_i32_31, %c0_i32_32] : memref<128x20xf32, #tpu.memory_space<any>> -> memref<32x20xf32, #tpu.memory_space<any>>
    %30 = tpu.memref_slice %arg2[%c3_i32_28] : memref<4x!tpu.dma_semaphore, #tpu.memory_space<semaphore_mem>> -> memref<1x!tpu.dma_semaphore, #tpu.memory_space<semaphore_mem>>
    %31 = tpu.memref_squeeze %30 : memref<1x!tpu.dma_semaphore, #tpu.memory_space<semaphore_mem>> -> memref<!tpu.dma_semaphore, #tpu.memory_space<semaphore_mem>>
    tpu.wait_dma2 semaphore(%31 : memref<!tpu.dma_semaphore, #tpu.memory_space<semaphore_mem>>) src(%28 : memref<32x20xf32, #tpu.memory_space<any>>) dst(%29 : memref<32x20xf32, #tpu.memory_space<any>>)
    return
  }
}

</mosaic_0001>

<llo_original>
// kernel: tpu_custom_call.1
$region0: #{tpu_custom_call.1}
  #allocation0 [shape = 'u32[]', space=smem, size = 0x4, offset = 0x4, fixed_abs, tag = 'smem constant byte address 0x4 - core index']
  #allocation1 [shape = 'u32[144,128]{1,0:T(1,128)}', space=vmem, size = 0x12000, scoped, tag = 'internal scratch']
  #allocation2 [shape = 's32[4]{0}', space=sflag, size = 0x10, scoped, tag = 'scratch operand']
  #allocation3 [shape = 's32[]', space=sflag, size = 0x4, offset = 0, fixed_abs, tag = 'sflag constant byte address 0x0 - dummy sync flag']
  #allocation4 [shape = 's32[]', space=sflag, size = 0x4, offset = 0, fixed_abs, tag = 'sflag constant byte address 0x0 - dummy sync flag']
  #allocation5 [shape = 's32[]', space=sflag, size = 0x4, offset = 0, fixed_abs, tag = 'sflag constant byte address 0x0 - dummy sync flag']
  #allocation6 [shape = 's32[]', space=sflag, size = 0x4, offset = 0, fixed_abs, tag = 'sflag constant byte address 0x0 - dummy sync flag']
  %s0 = inlined_call_operand.vmem [shape: f32[128,20], index: 0, kind: input, shape index: {}]
  %s1 = inlined_call_operand.vmem [shape: f32[128,20], index: 1, kind: output, shape index: {}]
  %s2 = sld [smem:[#allocation0]]
  $region138: #{tpu_custom_call.1} parent=0
    _
  %s4 = ssub.s32 1, %s2
  %s5 = scalar_select 0, %s4, %s2
  %p7 = scmp.lt.u32.totalorder 32, 8
  %p8 = pneg %p7
  // Predicated region
  $region2: #{tpu_custom_call.1} parent=0 // pred_check
    _
  $region3: #{tpu_custom_call.1} parent=0 // pred_check_branch
    %10 = sbr.rel (%p7) target = $region5
  $region4: #{tpu_custom_call.1} parent=0 // pred_region
    %s25 = sand.u32 32, 7
    %p26 = scmp.eq.s32.totalorder %s25, 0
    // Predicated region
    $region17: #{tpu_custom_call.1} parent=4 // pred_check
      %p27 = pneg %p26
    $region18: #{tpu_custom_call.1} parent=4 // pred_check_branch
      %29 = sbr.rel (%p27) target = $region20
    $region19: #{tpu_custom_call.1} parent=4 // pred_region
      loop: start=0, step=1, limit=1
      $region21: #{tpu_custom_call.1} parent=19 // loop_pre_header
        _
      $region22: #{tpu_custom_call.1} parent=19 // loop_header
        %s31 = sphi 0, %s35
        %p32 = scmp.ge.s32.totalorder %s31, 1
        %s36 = sphi %s0, %s0
        %s37 = sphi %s1, %s1
      $region23: #{tpu_custom_call.1} parent=19 // loop_header_branch
        %34 = sbr.rel (%p32) target = $region27
      $region24: #{tpu_custom_call.1} parent=19 // loop_body
        %v38 = vld [vmem:[%s36] sm:$0xff]
        %39 = vst [vmem:[%s37] sm:$0xff] %v38
        %v40 = vld [vmem:[%s36 + $0x8] sm:$0xff]
        %41 = vst [vmem:[%s37 + $0x8] sm:$0xff] %v40
        %v42 = vld [vmem:[%s36 + $0x10] sm:$0xff]
        %43 = vst [vmem:[%s37 + $0x10] sm:$0xff] %v42
        %v44 = vld [vmem:[%s36 + $0x18] sm:$0xff]
        %45 = vst [vmem:[%s37 + $0x18] sm:$0xff] %v44
      $region25: #{tpu_custom_call.1} parent=19 // loop_footer
        %s35 = sadd.s32 1, %s31
      $region26: #{tpu_custom_call.1} parent=19 // loop_footer_branch
        %30 = sbr.rel target = $region22
      $region27: #{tpu_custom_call.1} parent=19 // loop_exit
        _
    $region20: #{tpu_custom_call.1} parent=4 // pred_fallthru
      _
    %p46 = pneg %p26
    // Predicated region
    $region28: #{tpu_custom_call.1} parent=4 // pred_check
      _
    $region29: #{tpu_custom_call.1} parent=4 // pred_check_branch
      %48 = sbr.rel (%p26) target = $region31
    $region30: #{tpu_custom_call.1} parent=4 // pred_region
      %s49 = sand.u32 32, 7
    $region31: #{tpu_custom_call.1} parent=4 // pred_fallthru
      _
  $region5: #{tpu_custom_call.1} parent=0 // pred_fallthru
    _
  // Predicated region
  $region6: #{tpu_custom_call.1} parent=0 // pred_check
    %p11 = pneg %p7
  $region7: #{tpu_custom_call.1} parent=0 // pred_check_branch
    %13 = sbr.rel (%p11) target = $region9
  $region8: #{tpu_custom_call.1} parent=0 // pred_region
    %s14 = sshllo.u32 0, 32
    loop: start=0, step=1, limit=1
    $region10: #{tpu_custom_call.1} parent=8 // loop_pre_header
      _
    $region11: #{tpu_custom_call.1} parent=8 // loop_header
      %s16 = sphi 0, %s20
      %p17 = scmp.ge.s32.totalorder %s16, 1
      %s21 = sphi %s0, %s0
      %s22 = sphi %s1, %s1
    $region12: #{tpu_custom_call.1} parent=8 // loop_header_branch
      %19 = sbr.rel (%p17) target = $region16
    $region13: #{tpu_custom_call.1} parent=8 // loop_body
      %v23 = vld [vmem:[%s21] sm:%s14]
      %24 = vst [vmem:[%s22] sm:%s14] %v23
    $region14: #{tpu_custom_call.1} parent=8 // loop_footer
      %s20 = sadd.s32 1, %s16
    $region15: #{tpu_custom_call.1} parent=8 // loop_footer_branch
      %15 = sbr.rel target = $region11
    $region16: #{tpu_custom_call.1} parent=8 // loop_exit
      _
  $region9: #{tpu_custom_call.1} parent=0 // pred_fallthru
    _
  // Predicated region
  $region32: #{tpu_custom_call.1} parent=0 // pred_check
    _
  $region33: #{tpu_custom_call.1} parent=0 // pred_check_branch
    %52 = sbr.rel (0) target = $region35
  $region34: #{tpu_custom_call.1} parent=0 // pred_region
    %53 = vsyncadd [#allocation2], 512
  $region35: #{tpu_custom_call.1} parent=0 // pred_fallthru
    _
  %s54 = scalar_lea.vmem %s0, 32
  %s55 = scalar_lea.vmem %s1, 32
  %s56 = scalar_lea.sflag [#allocation2], 1
  %p58 = scmp.lt.u32.totalorder 32, 8
  %p59 = pneg %p58
  // Predicated region
  $region36: #{tpu_custom_call.1} parent=0 // pred_check
    _
  $region37: #{tpu_custom_call.1} parent=0 // pred_check_branch
    %61 = sbr.rel (%p58) target = $region39
  $region38: #{tpu_custom_call.1} parent=0 // pred_region
    %s76 = sand.u32 32, 7
    %p77 = scmp.eq.s32.totalorder %s76, 0
    // Predicated region
    $region51: #{tpu_custom_call.1} parent=38 // pred_check
      %p78 = pneg %p77
    $region52: #{tpu_custom_call.1} parent=38 // pred_check_branch
      %80 = sbr.rel (%p78) target = $region54
    $region53: #{tpu_custom_call.1} parent=38 // pred_region
      loop: start=0, step=1, limit=1
      $region55: #{tpu_custom_call.1} parent=53 // loop_pre_header
        _
      $region56: #{tpu_custom_call.1} parent=53 // loop_header
        %s82 = sphi 0, %s86
        %p83 = scmp.ge.s32.totalorder %s82, 1
        %s87 = sphi %s54, %s54
        %s88 = sphi %s55, %s55
      $region57: #{tpu_custom_call.1} parent=53 // loop_header_branch
        %85 = sbr.rel (%p83) target = $region61
      $region58: #{tpu_custom_call.1} parent=53 // loop_body
        %v89 = vld [vmem:[%s87] sm:$0xff]
        %90 = vst [vmem:[%s88] sm:$0xff] %v89
        %v91 = vld [vmem:[%s87 + $0x8] sm:$0xff]
        %92 = vst [vmem:[%s88 + $0x8] sm:$0xff] %v91
        %v93 = vld [vmem:[%s87 + $0x10] sm:$0xff]
        %94 = vst [vmem:[%s88 + $0x10] sm:$0xff] %v93
        %v95 = vld [vmem:[%s87 + $0x18] sm:$0xff]
        %96 = vst [vmem:[%s88 + $0x18] sm:$0xff] %v95
      $region59: #{tpu_custom_call.1} parent=53 // loop_footer
        %s86 = sadd.s32 1, %s82
      $region60: #{tpu_custom_call.1} parent=53 // loop_footer_branch
        %81 = sbr.rel target = $region56
      $region61: #{tpu_custom_call.1} parent=53 // loop_exit
        _
    $region54: #{tpu_custom_call.1} parent=38 // pred_fallthru
      _
    %p97 = pneg %p77
    // Predicated region
    $region62: #{tpu_custom_call.1} parent=38 // pred_check
      _
    $region63: #{tpu_custom_call.1} parent=38 // pred_check_branch
      %99 = sbr.rel (%p77) target = $region65
    $region64: #{tpu_custom_call.1} parent=38 // pred_region
      %s100 = sand.u32 32, 7
    $region65: #{tpu_custom_call.1} parent=38 // pred_fallthru
      _
  $region39: #{tpu_custom_call.1} parent=0 // pred_fallthru
    _
  // Predicated region
  $region40: #{tpu_custom_call.1} parent=0 // pred_check
    %p62 = pneg %p58
  $region41: #{tpu_custom_call.1} parent=0 // pred_check_branch
    %64 = sbr.rel (%p62) target = $region43
  $region42: #{tpu_custom_call.1} parent=0 // pred_region
    %s65 = sshllo.u32 0, 32
    loop: start=0, step=1, limit=1
    $region44: #{tpu_custom_call.1} parent=42 // loop_pre_header
      _
    $region45: #{tpu_custom_call.1} parent=42 // loop_header
      %s67 = sphi 0, %s71
      %p68 = scmp.ge.s32.totalorder %s67, 1
      %s72 = sphi %s54, %s54
      %s73 = sphi %s55, %s55
    $region46: #{tpu_custom_call.1} parent=42 // loop_header_branch
      %70 = sbr.rel (%p68) target = $region50
    $region47: #{tpu_custom_call.1} parent=42 // loop_body
      %v74 = vld [vmem:[%s72] sm:%s65]
      %75 = vst [vmem:[%s73] sm:%s65] %v74
    $region48: #{tpu_custom_call.1} parent=42 // loop_footer
      %s71 = sadd.s32 1, %s67
    $region49: #{tpu_custom_call.1} parent=42 // loop_footer_branch
      %66 = sbr.rel target = $region45
    $region50: #{tpu_custom_call.1} parent=42 // loop_exit
      _
  $region43: #{tpu_custom_call.1} parent=0 // pred_fallthru
    _
  // Predicated region
  $region66: #{tpu_custom_call.1} parent=0 // pred_check
    _
  $region67: #{tpu_custom_call.1} parent=0 // pred_check_branch
    %103 = sbr.rel (0) target = $region69
  $region68: #{tpu_custom_call.1} parent=0 // pred_region
    %104 = vsyncadd %s56, 512
  $region69: #{tpu_custom_call.1} parent=0 // pred_fallthru
    _
  %s105 = scalar_lea.vmem %s0, 64
  %s106 = scalar_lea.vmem %s1, 64
  %s107 = scalar_lea.sflag [#allocation2], 2
  %p109 = scmp.lt.u32.totalorder 32, 8
  %p110 = pneg %p109
  // Predicated region
  $region70: #{tpu_custom_call.1} parent=0 // pred_check
    _
  $region71: #{tpu_custom_call.1} parent=0 // pred_check_branch
    %112 = sbr.rel (%p109) target = $region73
  $region72: #{tpu_custom_call.1} parent=0 // pred_region
    %s127 = sand.u32 32, 7
    %p128 = scmp.eq.s32.totalorder %s127, 0
    // Predicated region
    $region85: #{tpu_custom_call.1} parent=72 // pred_check
      %p129 = pneg %p128
    $region86: #{tpu_custom_call.1} parent=72 // pred_check_branch
      %131 = sbr.rel (%p129) target = $region88
    $region87: #{tpu_custom_call.1} parent=72 // pred_region
      loop: start=0, step=1, limit=1
      $region89: #{tpu_custom_call.1} parent=87 // loop_pre_header
        _
      $region90: #{tpu_custom_call.1} parent=87 // loop_header
        %s133 = sphi 0, %s137
        %p134 = scmp.ge.s32.totalorder %s133, 1
        %s138 = sphi %s105, %s105
        %s139 = sphi %s106, %s106
      $region91: #{tpu_custom_call.1} parent=87 // loop_header_branch
        %136 = sbr.rel (%p134) target = $region95
      $region92: #{tpu_custom_call.1} parent=87 // loop_body
        %v140 = vld [vmem:[%s138] sm:$0xff]
        %141 = vst [vmem:[%s139] sm:$0xff] %v140
        %v142 = vld [vmem:[%s138 + $0x8] sm:$0xff]
        %143 = vst [vmem:[%s139 + $0x8] sm:$0xff] %v142
        %v144 = vld [vmem:[%s138 + $0x10] sm:$0xff]
        %145 = vst [vmem:[%s139 + $0x10] sm:$0xff] %v144
        %v146 = vld [vmem:[%s138 + $0x18] sm:$0xff]
        %147 = vst [vmem:[%s139 + $0x18] sm:$0xff] %v146
      $region93: #{tpu_custom_call.1} parent=87 // loop_footer
        %s137 = sadd.s32 1, %s133
      $region94: #{tpu_custom_call.1} parent=87 // loop_footer_branch
        %132 = sbr.rel target = $region90
      $region95: #{tpu_custom_call.1} parent=87 // loop_exit
        _
    $region88: #{tpu_custom_call.1} parent=72 // pred_fallthru
      _
    %p148 = pneg %p128
    // Predicated region
    $region96: #{tpu_custom_call.1} parent=72 // pred_check
      _
    $region97: #{tpu_custom_call.1} parent=72 // pred_check_branch
      %150 = sbr.rel (%p128) target = $region99
    $region98: #{tpu_custom_call.1} parent=72 // pred_region
      %s151 = sand.u32 32, 7
    $region99: #{tpu_custom_call.1} parent=72 // pred_fallthru
      _
  $region73: #{tpu_custom_call.1} parent=0 // pred_fallthru
    _
  // Predicated region
  $region74: #{tpu_custom_call.1} parent=0 // pred_check
    %p113 = pneg %p109
  $region75: #{tpu_custom_call.1} parent=0 // pred_check_branch
    %115 = sbr.rel (%p113) target = $region77
  $region76: #{tpu_custom_call.1} parent=0 // pred_region
    %s116 = sshllo.u32 0, 32
    loop: start=0, step=1, limit=1
    $region78: #{tpu_custom_call.1} parent=76 // loop_pre_header
      _
    $region79: #{tpu_custom_call.1} parent=76 // loop_header
      %s118 = sphi 0, %s122
      %p119 = scmp.ge.s32.totalorder %s118, 1
      %s123 = sphi %s105, %s105
      %s124 = sphi %s106, %s106
    $region80: #{tpu_custom_call.1} parent=76 // loop_header_branch
      %121 = sbr.rel (%p119) target = $region84
    $region81: #{tpu_custom_call.1} parent=76 // loop_body
      %v125 = vld [vmem:[%s123] sm:%s116]
      %126 = vst [vmem:[%s124] sm:%s116] %v125
    $region82: #{tpu_custom_call.1} parent=76 // loop_footer
      %s122 = sadd.s32 1, %s118
    $region83: #{tpu_custom_call.1} parent=76 // loop_footer_branch
      %117 = sbr.rel target = $region79
    $region84: #{tpu_custom_call.1} parent=76 // loop_exit
      _
  $region77: #{tpu_custom_call.1} parent=0 // pred_fallthru
    _
  // Predicated region
  $region100: #{tpu_custom_call.1} parent=0 // pred_check
    _
  $region101: #{tpu_custom_call.1} parent=0 // pred_check_branch
    %154 = sbr.rel (0) target = $region103
  $region102: #{tpu_custom_call.1} parent=0 // pred_region
    %155 = vsyncadd %s107, 512
  $region103: #{tpu_custom_call.1} parent=0 // pred_fallthru
    _
  %s156 = scalar_lea.vmem %s0, 96
  %s157 = scalar_lea.vmem %s1, 96
  %s158 = scalar_lea.sflag [#allocation2], 3
  %p160 = scmp.lt.u32.totalorder 32, 8
  %p161 = pneg %p160
  // Predicated region
  $region104: #{tpu_custom_call.1} parent=0 // pred_check
    _
  $region105: #{tpu_custom_call.1} parent=0 // pred_check_branch
    %163 = sbr.rel (%p160) target = $region107
  $region106: #{tpu_custom_call.1} parent=0 // pred_region
    %s178 = sand.u32 32, 7
    %p179 = scmp.eq.s32.totalorder %s178, 0
    // Predicated region
    $region119: #{tpu_custom_call.1} parent=106 // pred_check
      %p180 = pneg %p179
    $region120: #{tpu_custom_call.1} parent=106 // pred_check_branch
      %182 = sbr.rel (%p180) target = $region122
    $region121: #{tpu_custom_call.1} parent=106 // pred_region
      loop: start=0, step=1, limit=1
      $region123: #{tpu_custom_call.1} parent=121 // loop_pre_header
        _
      $region124: #{tpu_custom_call.1} parent=121 // loop_header
        %s184 = sphi 0, %s188
        %p185 = scmp.ge.s32.totalorder %s184, 1
        %s189 = sphi %s156, %s156
        %s190 = sphi %s157, %s157
      $region125: #{tpu_custom_call.1} parent=121 // loop_header_branch
        %187 = sbr.rel (%p185) target = $region129
      $region126: #{tpu_custom_call.1} parent=121 // loop_body
        %v191 = vld [vmem:[%s189] sm:$0xff]
        %192 = vst [vmem:[%s190] sm:$0xff] %v191
        %v193 = vld [vmem:[%s189 + $0x8] sm:$0xff]
        %194 = vst [vmem:[%s190 + $0x8] sm:$0xff] %v193
        %v195 = vld [vmem:[%s189 + $0x10] sm:$0xff]
        %196 = vst [vmem:[%s190 + $0x10] sm:$0xff] %v195
        %v197 = vld [vmem:[%s189 + $0x18] sm:$0xff]
        %198 = vst [vmem:[%s190 + $0x18] sm:$0xff] %v197
      $region127: #{tpu_custom_call.1} parent=121 // loop_footer
        %s188 = sadd.s32 1, %s184
      $region128: #{tpu_custom_call.1} parent=121 // loop_footer_branch
        %183 = sbr.rel target = $region124
      $region129: #{tpu_custom_call.1} parent=121 // loop_exit
        _
    $region122: #{tpu_custom_call.1} parent=106 // pred_fallthru
      _
    %p199 = pneg %p179
    // Predicated region
    $region130: #{tpu_custom_call.1} parent=106 // pred_check
      _
    $region131: #{tpu_custom_call.1} parent=106 // pred_check_branch
      %201 = sbr.rel (%p179) target = $region133
    $region132: #{tpu_custom_call.1} parent=106 // pred_region
      %s202 = sand.u32 32, 7
    $region133: #{tpu_custom_call.1} parent=106 // pred_fallthru
      _
  $region107: #{tpu_custom_call.1} parent=0 // pred_fallthru
    _
  // Predicated region
  $region108: #{tpu_custom_call.1} parent=0 // pred_check
    %p164 = pneg %p160
  $region109: #{tpu_custom_call.1} parent=0 // pred_check_branch
    %166 = sbr.rel (%p164) target = $region111
  $region110: #{tpu_custom_call.1} parent=0 // pred_region
    %s167 = sshllo.u32 0, 32
    loop: start=0, step=1, limit=1
    $region112: #{tpu_custom_call.1} parent=110 // loop_pre_header
      _
    $region113: #{tpu_custom_call.1} parent=110 // loop_header
      %s169 = sphi 0, %s173
      %p170 = scmp.ge.s32.totalorder %s169, 1
      %s174 = sphi %s156, %s156
      %s175 = sphi %s157, %s157
    $region114: #{tpu_custom_call.1} parent=110 // loop_header_branch
      %172 = sbr.rel (%p170) target = $region118
    $region115: #{tpu_custom_call.1} parent=110 // loop_body
      %v176 = vld [vmem:[%s174] sm:%s167]
      %177 = vst [vmem:[%s175] sm:%s167] %v176
    $region116: #{tpu_custom_call.1} parent=110 // loop_footer
      %s173 = sadd.s32 1, %s169
    $region117: #{tpu_custom_call.1} parent=110 // loop_footer_branch
      %168 = sbr.rel target = $region113
    $region118: #{tpu_custom_call.1} parent=110 // loop_exit
      _
  $region111: #{tpu_custom_call.1} parent=0 // pred_fallthru
    _
  // Predicated region
  $region134: #{tpu_custom_call.1} parent=0 // pred_check
    _
  $region135: #{tpu_custom_call.1} parent=0 // pred_check_branch
    %205 = sbr.rel (0) target = $region137
  $region136: #{tpu_custom_call.1} parent=0 // pred_region
    %206 = vsyncadd %s158, 512
  $region137: #{tpu_custom_call.1} parent=0 // pred_fallthru
    _
  %s207 = smul.u32 32, 1
  %s208 = sshll.u32 %s207, 4
  %209 = dma.done [#allocation2], %s208
  %s210 = sshll.u32 %s207, 4
  %211 = dma.done %s56, %s210
  %s212 = sshll.u32 %s207, 4
  %213 = dma.done %s107, %s212
  %s214 = sshll.u32 %s207, 4
  %215 = dma.done %s158, %s214
  %216 = vsyncmov [#allocation2]
  %s217 = vpop.sfrf %216
  %p218 = scmp.eq.s32.totalorder %s217, 0
  %p219 = pneg %p218
  %221 = shalt.err (%p219)
  %s222 = scalar_lea.sflag [#allocation2], 1
  %223 = vsyncmov %s222
  %s224 = vpop.sfrf %223
  %p225 = scmp.eq.s32.totalorder %s224, 0
  %p226 = pneg %p225
  %228 = shalt.err (%p226)
  %s229 = scalar_lea.sflag [#allocation2], 2
  %230 = vsyncmov %s229
  %s231 = vpop.sfrf %230
  %p232 = scmp.eq.s32.totalorder %s231, 0
  %p233 = pneg %p232
  %235 = shalt.err (%p233)
  %s236 = scalar_lea.sflag [#allocation2], 3
  %237 = vsyncmov %s236
  %s238 = vpop.sfrf %237
  %p239 = scmp.eq.s32.totalorder %s238, 0
  %p240 = pneg %p239
  %242 = shalt.err (%p240)

</llo_original>
